<compile_context>
chip_gen: v6e
topology: v6e:2x2x1
jax: 0.10.0
libtpu: 0.0.40
codegen_flags: <defaults>
</compile_context>

<pallas_src>
import functools

import jax
import jax.numpy as jnp
from jax.experimental import pallas as pl
from jax.experimental.pallas import tpu as pltpu


def _round_up(x, m):
    return ((x + m - 1) // m) * m


def _pad_to(arr, shape):
    pads = [(0, t - s) for s, t in zip(arr.shape, shape)]
    return jnp.pad(arr, pads)


def _mlp_kernel(x_ref, *refs, n_layers, compute_dtype):
    """refs = [w0, b0, w1, b1, ..., w_{L-1}, b_{L-1}, o_ref].

    h = relu(x @ w0 + b0); ... ; out = h @ w_{L-1} + b_{L-1}
    Matmul operands are `compute_dtype` (bf16); accumulate/bias/ReLU in f32.
    """
    o_ref = refs[-1]
    param_refs = refs[:-1]

    h = x_ref[...]                                  # (TM, K0_pad) compute_dtype
    for layer in range(n_layers):
        w = param_refs[2 * layer][...]              # (K_pad, N_pad) compute_dtype
        b = param_refs[2 * layer + 1][...]          # (1, N_pad)     float32
        acc = jnp.dot(h, w, preferred_element_type=jnp.float32) + b
        if layer != n_layers - 1:
            h = jnp.maximum(acc, 0.0).astype(compute_dtype)  # ReLU, bf16 for next MXU pass
        else:
            h = acc                                           # final layer: no activation
    o_ref[...] = h.astype(o_ref.dtype)


@functools.partial(jax.jit, static_argnames=("matrix_dimension", "compute_dtype", "tile_m"))
def mlp_forward(x, params, matrix_dimension, *, compute_dtype=jnp.bfloat16, tile_m=512):
    """x: (B, C, md, md) float32.  params: list of (W (in,out) f32, b (1,out) f32)."""
    B, C, H, W = x.shape
    assert H == matrix_dimension and W == matrix_dimension
    in_features = H * W
    M = B * C
    n_layers = len(params)
    out_features = params[-1][0].shape[1]
    assert out_features == matrix_dimension ** 2

    # --- Row tiling: TM multiple of 8 sublanes, M padded so TM divides it. ---
    tm = _round_up(min(tile_m, M), 8)
    m_pad = _round_up(M, tm)
    n_tiles = m_pad // tm

    # --- Lane-dense feature padding: every layer width rounded up to 128. ---
    dims = [in_features] + [w.shape[1] for w, _ in params]
    pdims = [_round_up(d, 128) for d in dims]

    x_rows = _pad_to(x.reshape(M, in_features).astype(compute_dtype), (m_pad, pdims[0]))

    flat_params = []
    in_specs = [pl.BlockSpec((tm, pdims[0]), lambda i: (i, 0))]
    for l, (w, b) in enumerate(params):
        wp = _pad_to(w.astype(compute_dtype), (pdims[l], pdims[l + 1]))
        bp = _pad_to(b.astype(jnp.float32), (1, pdims[l + 1]))
        flat_params.append(wp)
        flat_params.append(bp)
        # Same block for every row tile -> weights/biases stay VMEM-resident.
        in_specs.append(pl.BlockSpec(wp.shape, lambda i: (0, 0)))
        in_specs.append(pl.BlockSpec(bp.shape, lambda i: (0, 0)))
    out_spec = pl.BlockSpec((tm, pdims[-1]), lambda i: (i, 0))

    flops = 2 * m_pad * sum(pdims[l] * pdims[l + 1] for l in range(n_layers))
    bytes_accessed = (
        m_pad * pdims[0] * jnp.dtype(compute_dtype).itemsize
        + sum(p.size * p.dtype.itemsize for p in flat_params)
        + m_pad * pdims[-1] * jnp.dtype(x.dtype).itemsize
    )

    kernel = functools.partial(_mlp_kernel, n_layers=n_layers, compute_dtype=compute_dtype)

    out_rows = pl.pallas_call(
        kernel,
        out_shape=jax.ShapeDtypeStruct((m_pad, pdims[-1]), x.dtype),
        grid_spec=pltpu.PrefetchScalarGridSpec(
            num_scalar_prefetch=0,
            grid=(n_tiles,),
            in_specs=in_specs,
            out_specs=out_spec,
        ),
        compiler_params=pltpu.CompilerParams(
            dimension_semantics=("parallel",),   # independent row tiles -> megacore on v7x
        ),
        cost_estimate=pl.CostEstimate(
            flops=flops, transcendentals=0, bytes_accessed=bytes_accessed
        ),
    )(x_rows, *flat_params)

    out = out_rows[:M, :out_features]
    return out.reshape(B, C, matrix_dimension, matrix_dimension)


def init_params(key, input_features, hidden_layers, n_neurons, matrix_dimension):
    """Deterministic init mimicking PyTorch Linear default (U(-1/sqrt(fan_in), +))."""
    dims = [input_features] + [n_neurons] * hidden_layers + [matrix_dimension ** 2]
    params = []
    for i in range(len(dims) - 1):
        fan_in, fan_out = dims[i], dims[i + 1]
        key, kw, kb = jax.random.split(key, 3)
        bound = 1.0 / (fan_in ** 0.5)
        w = jax.random.uniform(kw, (fan_in, fan_out), jnp.float32, -bound, bound)
        b = jax.random.uniform(kb, (1, fan_out), jnp.float32, -bound, bound)
        params.append((w, b))
    return params


def reference_forward(x, params, matrix_dimension, compute_dtype=jnp.bfloat16):
    """Pure-jnp reference with the same bf16-operand / f32-accumulate recipe."""
    B, C, H, W = x.shape
    h = x.reshape(B * C, H * W).astype(compute_dtype)
    n_layers = len(params)
    for i, (w, b) in enumerate(params):
        acc = jnp.dot(h, w.astype(compute_dtype), preferred_element_type=jnp.float32) + b
        if i != n_layers - 1:
            h = jnp.maximum(acc, 0.0).astype(compute_dtype)
        else:
            h = acc
    return h.astype(x.dtype).reshape(B, C, matrix_dimension, matrix_dimension)


if __name__ == "__main__":
    # Module-consistent small config:
    #   matrix_dimension=16 -> input_features = 256, output = 256
    #   hidden_layers=2, n_neurons=32
    matrix_dimension = 16
    input_features = matrix_dimension * matrix_dimension
    hidden_layers = 2
    n_neurons = 32

    key = jax.random.PRNGKey(0)
    params = init_params(key, input_features, hidden_layers, n_neurons, matrix_dimension)

    # --- Test 1: the shipped tiny shape (B=2, C=4 -> M=8 rows, single tile). ---
    key, kx = jax.random.split(key)
    x_small = jax.random.normal(kx, (2, 4, matrix_dimension, matrix_dimension), jnp.float32)
    out_small = jax.block_until_ready(mlp_forward(x_small, params, matrix_dimension))
    ref_small = reference_forward(x_small, params, matrix_dimension)
    assert out_small.shape == (2, 4, matrix_dimension, matrix_dimension)
    assert jnp.allclose(out_small, ref_small, atol=2e-2, rtol=2e-2), "mismatch (small)"

    # --- Test 2: a larger batch (M=512) that exercises the row grid (>1 tile). ---
    key, kx2 = jax.random.split(key)
    x_big = jax.random.normal(kx2, (4, 128, matrix_dimension, matrix_dimension), jnp.float32)
    out_big = jax.block_until_ready(mlp_forward(x_big, params, matrix_dimension, tile_m=256))
    ref_big = reference_forward(x_big, params, matrix_dimension)
    assert out_big.shape == (4, 128, matrix_dimension, matrix_dimension)
    assert jnp.allclose(out_big, ref_big, atol=2e-2, rtol=2e-2), "mismatch (big)"

    print("KERNEL_OK")
</pallas_src>

<mosaic_0001>
module attributes {stable_mosaic.version = 11 : i64} {
  func.func @_mlp_kernel(%arg0: i32, %arg1: memref<8x256xbf16, #tpu.memory_space<vmem>>, %arg2: memref<256x128xbf16, #tpu.memory_space<vmem>>, %arg3: memref<1x128xf32, #tpu.memory_space<vmem>>, %arg4: memref<128x128xbf16, #tpu.memory_space<vmem>>, %arg5: memref<1x128xf32, #tpu.memory_space<vmem>>, %arg6: memref<128x256xbf16, #tpu.memory_space<vmem>>, %arg7: memref<1x256xf32, #tpu.memory_space<vmem>>, %arg8: memref<8x256xf32, #tpu.memory_space<vmem>>) attributes {dimension_semantics = [#tpu.dimension_semantics<parallel>], iteration_bounds = array<i64: 1>, scalar_prefetch = 0 : i64, scratch_operands = 0 : i64, tpu.core_type = #tpu.core_type<tc>, window_params = [{transform_indices = @transform_0, window_bounds = array<i64: 8, 256>}, {pipeline_mode = #tpu.pipeline_mode<synchronous>, transform_indices = @transform_1, window_bounds = array<i64: 256, 128>}, {pipeline_mode = #tpu.pipeline_mode<synchronous>, transform_indices = @transform_2, window_bounds = array<i64: 1, 128>}, {pipeline_mode = #tpu.pipeline_mode<synchronous>, transform_indices = @transform_3, window_bounds = array<i64: 128, 128>}, {pipeline_mode = #tpu.pipeline_mode<synchronous>, transform_indices = @transform_4, window_bounds = array<i64: 1, 128>}, {pipeline_mode = #tpu.pipeline_mode<synchronous>, transform_indices = @transform_5, window_bounds = array<i64: 128, 256>}, {pipeline_mode = #tpu.pipeline_mode<synchronous>, transform_indices = @transform_6, window_bounds = array<i64: 1, 256>}, {transform_indices = @transform_7, window_bounds = array<i64: 8, 256>}]} {
    %c0 = arith.constant 0 : index
    %c0_0 = arith.constant 0 : index
    %0 = vector.load %arg1[%c0, %c0_0] : memref<8x256xbf16, #tpu.memory_space<vmem>>, vector<8x256xbf16>
    %c0_1 = arith.constant 0 : index
    %c0_2 = arith.constant 0 : index
    %1 = vector.load %arg2[%c0_1, %c0_2] : memref<256x128xbf16, #tpu.memory_space<vmem>>, vector<256x128xbf16>
    %c0_3 = arith.constant 0 : index
    %c0_4 = arith.constant 0 : index
    %2 = vector.load %arg3[%c0_3, %c0_4] : memref<1x128xf32, #tpu.memory_space<vmem>>, vector<1x128xf32>
    %cst = arith.constant dense<0.000000e+00> : vector<8x128xf32>
    %3 = tpu.matmul %0, %1, %cst {dimension_numbers = #tpu.dot_dimension_numbers<[1], [0], [0], [1], [0, 0, 1, 1], [], []>} : vector<8x256xbf16>, vector<256x128xbf16>, vector<8x128xf32> -> vector<8x128xf32>
    %4 = vector.broadcast %2 : vector<1x128xf32> to vector<8x128xf32>
    %5 = arith.addf %3, %4 : vector<8x128xf32>
    %cst_5 = arith.constant 0.000000e+00 : f32
    %6 = vector.broadcast %cst_5 : f32 to vector<8x128xf32>
    %7 = arith.maximumf %5, %6 : vector<8x128xf32>
    %8 = arith.truncf %7 : vector<8x128xf32> to vector<8x128xbf16>
    %c0_6 = arith.constant 0 : index
    %c0_7 = arith.constant 0 : index
    %9 = vector.load %arg4[%c0_6, %c0_7] : memref<128x128xbf16, #tpu.memory_space<vmem>>, vector<128x128xbf16>
    %c0_8 = arith.constant 0 : index
    %c0_9 = arith.constant 0 : index
    %10 = vector.load %arg5[%c0_8, %c0_9] : memref<1x128xf32, #tpu.memory_space<vmem>>, vector<1x128xf32>
    %cst_10 = arith.constant dense<0.000000e+00> : vector<8x128xf32>
    %11 = tpu.matmul %8, %9, %cst_10 {dimension_numbers = #tpu.dot_dimension_numbers<[1], [0], [0], [1], [0, 0, 1, 1], [], []>} : vector<8x128xbf16>, vector<128x128xbf16>, vector<8x128xf32> -> vector<8x128xf32>
    %12 = vector.broadcast %10 : vector<1x128xf32> to vector<8x128xf32>
    %13 = arith.addf %11, %12 : vector<8x128xf32>
    %cst_11 = arith.constant 0.000000e+00 : f32
    %14 = vector.broadcast %cst_11 : f32 to vector<8x128xf32>
    %15 = arith.maximumf %13, %14 : vector<8x128xf32>
    %16 = arith.truncf %15 : vector<8x128xf32> to vector<8x128xbf16>
    %c0_12 = arith.constant 0 : index
    %c0_13 = arith.constant 0 : index
    %17 = vector.load %arg6[%c0_12, %c0_13] : memref<128x256xbf16, #tpu.memory_space<vmem>>, vector<128x256xbf16>
    %c0_14 = arith.constant 0 : index
    %c0_15 = arith.constant 0 : index
    %18 = vector.load %arg7[%c0_14, %c0_15] : memref<1x256xf32, #tpu.memory_space<vmem>>, vector<1x256xf32>
    %cst_16 = arith.constant dense<0.000000e+00> : vector<8x256xf32>
    %19 = tpu.matmul %16, %17, %cst_16 {dimension_numbers = #tpu.dot_dimension_numbers<[1], [0], [0], [1], [0, 0, 1, 1], [], []>} : vector<8x128xbf16>, vector<128x256xbf16>, vector<8x256xf32> -> vector<8x256xf32>
    %20 = vector.broadcast %18 : vector<1x256xf32> to vector<8x256xf32>
    %21 = arith.addf %19, %20 : vector<8x256xf32>
    %c0_17 = arith.constant 0 : index
    %c0_18 = arith.constant 0 : index
    %22 = vector.load %arg8[%c0_17, %c0_18] : memref<8x256xf32, #tpu.memory_space<vmem>>, vector<8x256xf32>
    tpu.vector_store %arg8[%c0_17, %c0_18], %21 {strides = array<i32>} : memref<8x256xf32, #tpu.memory_space<vmem>>, vector<8x256xf32>,
    return
  }
  func.func @transform_0(%arg0: i32) -> (i32, i32) {
    %c0_i32 = arith.constant 0 : i32
    %c0_i32_0 = arith.constant 0 : i32
    return %arg0, %c0_i32 : i32, i32
  }
  func.func @transform_1(%arg0: i32) -> (i32, i32) {
    %c0_i32 = arith.constant 0 : i32
    %c0_i32_0 = arith.constant 0 : i32
    %c0_i32_1 = arith.constant 0 : i32
    return %c0_i32, %c0_i32_0 : i32, i32
  }
  func.func @transform_2(%arg0: i32) -> (i32, i32) {
    %c0_i32 = arith.constant 0 : i32
    %c0_i32_0 = arith.constant 0 : i32
    %c0_i32_1 = arith.constant 0 : i32
    return %c0_i32, %c0_i32_0 : i32, i32
  }
  func.func @transform_3(%arg0: i32) -> (i32, i32) {
    %c0_i32 = arith.constant 0 : i32
    %c0_i32_0 = arith.constant 0 : i32
    %c0_i32_1 = arith.constant 0 : i32
    return %c0_i32, %c0_i32_0 : i32, i32
  }
  func.func @transform_4(%arg0: i32) -> (i32, i32) {
    %c0_i32 = arith.constant 0 : i32
    %c0_i32_0 = arith.constant 0 : i32
    %c0_i32_1 = arith.constant 0 : i32
    return %c0_i32, %c0_i32_0 : i32, i32
  }
  func.func @transform_5(%arg0: i32) -> (i32, i32) {
    %c0_i32 = arith.constant 0 : i32
    %c0_i32_0 = arith.constant 0 : i32
    %c0_i32_1 = arith.constant 0 : i32
    return %c0_i32, %c0_i32_0 : i32, i32
  }
  func.func @transform_6(%arg0: i32) -> (i32, i32) {
    %c0_i32 = arith.constant 0 : i32
    %c0_i32_0 = arith.constant 0 : i32
    %c0_i32_1 = arith.constant 0 : i32
    return %c0_i32, %c0_i32_0 : i32, i32
  }
  func.func @transform_7(%arg0: i32) -> (i32, i32) {
    %c0_i32 = arith.constant 0 : i32
    %c0_i32_0 = arith.constant 0 : i32
    return %arg0, %c0_i32 : i32, i32
  }
}

</mosaic_0001>

<llo_original>
// kernel: mlp_forward.1
$region0: #{mlp_forward.1}
  #allocation0 [shape = 'u32[]', space=smem, size = 0x4, offset = 0x4, fixed_abs, tag = 'smem constant byte address 0x4 - core index']
  #allocation1 [shape = 'u32[144,128]{1,0:T(1,128)}', space=vmem, size = 0x12000, scoped, tag = 'internal scratch']
  %s0 = inlined_call_operand.vmem [shape: bf16[8,256], index: 0, kind: input, shape index: {}]
  %s1 = inlined_call_operand.vmem [shape: bf16[256,128], index: 1, kind: input, shape index: {}]
  %s2 = inlined_call_operand.vmem [shape: f32[1,128], index: 2, kind: input, shape index: {}]
  %s3 = inlined_call_operand.vmem [shape: bf16[128,128], index: 3, kind: input, shape index: {}]
  %s4 = inlined_call_operand.vmem [shape: f32[1,128], index: 4, kind: input, shape index: {}]
  %s5 = inlined_call_operand.vmem [shape: bf16[128,256], index: 5, kind: input, shape index: {}]
  %s6 = inlined_call_operand.vmem [shape: f32[1,256], index: 6, kind: input, shape index: {}]
  %s7 = inlined_call_operand.vmem [shape: f32[8,256], index: 7, kind: output, shape index: {}]
  %s8 = sld [smem:[#allocation0]]
  $region38: #{mlp_forward.1} parent=0
    _
  %s10 = ssub.s32 1, %s8
  %s11 = scalar_select 0, %s10, %s8
  // Predicated region
  $region2: #{mlp_forward.1} parent=0 // pred_check
    _
  $region3: #{mlp_forward.1} parent=0 // pred_check_branch
    %13 = sbr.rel (0) target = $region5
  $region4: #{mlp_forward.1} parent=0 // pred_region
    _
  $region5: #{mlp_forward.1} parent=0 // pred_fallthru
    _
  // Predicated region
  $region6: #{mlp_forward.1} parent=0 // pred_check
    _
  $region7: #{mlp_forward.1} parent=0 // pred_check_branch
    %15 = sbr.rel (0) target = $region9
  $region8: #{mlp_forward.1} parent=0 // pred_region
    _
  $region9: #{mlp_forward.1} parent=0 // pred_fallthru
    _
  // Predicated region
  $region10: #{mlp_forward.1} parent=0 // pred_check
    _
  $region11: #{mlp_forward.1} parent=0 // pred_check_branch
    %17 = sbr.rel (0) target = $region13
  $region12: #{mlp_forward.1} parent=0 // pred_region
    _
  $region13: #{mlp_forward.1} parent=0 // pred_fallthru
    _
  // Predicated region
  $region14: #{mlp_forward.1} parent=0 // pred_check
    _
  $region15: #{mlp_forward.1} parent=0 // pred_check_branch
    %19 = sbr.rel (0) target = $region17
  $region16: #{mlp_forward.1} parent=0 // pred_region
    _
  $region17: #{mlp_forward.1} parent=0 // pred_fallthru
    _
  // Predicated region
  $region18: #{mlp_forward.1} parent=0 // pred_check
    _
  $region19: #{mlp_forward.1} parent=0 // pred_check_branch
    %21 = sbr.rel (0) target = $region21
  $region20: #{mlp_forward.1} parent=0 // pred_region
    _
  $region21: #{mlp_forward.1} parent=0 // pred_fallthru
    _
  // Predicated region
  $region22: #{mlp_forward.1} parent=0 // pred_check
    _
  $region23: #{mlp_forward.1} parent=0 // pred_check_branch
    %23 = sbr.rel (0) target = $region25
  $region24: #{mlp_forward.1} parent=0 // pred_region
    _
  $region25: #{mlp_forward.1} parent=0 // pred_fallthru
    _
  // Predicated region
  $region26: #{mlp_forward.1} parent=0 // pred_check
    _
  $region27: #{mlp_forward.1} parent=0 // pred_check_branch
    %25 = sbr.rel (0) target = $region29
  $region28: #{mlp_forward.1} parent=0 // pred_region
    _
  $region29: #{mlp_forward.1} parent=0 // pred_fallthru
    _
  %v27 = vld [vmem:[%s0] sm:$0xff]
  %v28 = vld [vmem:[%s1] sm:$0xf]
  %v29 = vld [vmem:[%s1 + $0x4] sm:$0xf]
  %v30 = vld [vmem:[%s1 + $0x8] sm:$0xf]
  %v31 = vld [vmem:[%s1 + $0xc] sm:$0xf]
  %v32 = vld [vmem:[%s1 + $0x10] sm:$0xf]
  %v33 = vld [vmem:[%s1 + $0x14] sm:$0xf]
  %v34 = vld [vmem:[%s1 + $0x18] sm:$0xf]
  %v35 = vld [vmem:[%s1 + $0x1c] sm:$0xf]
  %v36 = vld [vmem:[%s1 + $0x20] sm:$0xf]
  %v37 = vld [vmem:[%s1 + $0x24] sm:$0xf]
  %v38 = vld [vmem:[%s1 + $0x28] sm:$0xf]
  %v39 = vld [vmem:[%s1 + $0x2c] sm:$0xf]
  %v40 = vld [vmem:[%s1 + $0x30] sm:$0xf]
  %v41 = vld [vmem:[%s1 + $0x34] sm:$0xf]
  %v42 = vld [vmem:[%s1 + $0x38] sm:$0xf]
  %v43 = vld [vmem:[%s1 + $0x3c] sm:$0xf]
  %v44 = vld [vmem:[%s1 + $0x40] sm:$0xf]
  %v45 = vld [vmem:[%s1 + $0x44] sm:$0xf]
  %v46 = vld [vmem:[%s1 + $0x48] sm:$0xf]
  %v47 = vld [vmem:[%s1 + $0x4c] sm:$0xf]
  %v48 = vld [vmem:[%s1 + $0x50] sm:$0xf]
  %v49 = vld [vmem:[%s1 + $0x54] sm:$0xf]
  %v50 = vld [vmem:[%s1 + $0x58] sm:$0xf]
  %v51 = vld [vmem:[%s1 + $0x5c] sm:$0xf]
  %v52 = vld [vmem:[%s1 + $0x60] sm:$0xf]
  %v53 = vld [vmem:[%s1 + $0x64] sm:$0xf]
  %v54 = vld [vmem:[%s1 + $0x68] sm:$0xf]
  %v55 = vld [vmem:[%s1 + $0x6c] sm:$0xf]
  %v56 = vld [vmem:[%s1 + $0x70] sm:$0xf]
  %v57 = vld [vmem:[%s1 + $0x74] sm:$0xf]
  %v58 = vld [vmem:[%s1 + $0x78] sm:$0xf]
  %v59 = vld [vmem:[%s1 + $0x7c] sm:$0xf]
  %v60 = vld [vmem:[%s2] sm:$0x1]
  %v62 = vlaneseq
  %v63 = vshrl.u32 %v62, 7
  %v64 = vsub.s32 0, %v63
  %v65 = vrot.slane %v60, %v64
  %v68 = vunpack.c.l.b16 %v27
  %v69 = vunpack.c.h.b16 %v27
  %v70 = vpack.c.b16 %v68, %v68
  %v71 = vpack.c.b16 %v69, %v69
  %v106 = vunpack.c.l.b16 %v28
  %v107 = vunpack.c.l.b16 %v29
  %v108 = vunpack.c.l.b16 %v30
  %v109 = vunpack.c.l.b16 %v31
  %v110 = vunpack.c.l.b16 %v32
  %v111 = vunpack.c.l.b16 %v33
  %v112 = vunpack.c.l.b16 %v34
  %v113 = vunpack.c.l.b16 %v35
  %v114 = vunpack.c.l.b16 %v36
  %v115 = vunpack.c.l.b16 %v37
  %v116 = vunpack.c.l.b16 %v38
  %v117 = vunpack.c.l.b16 %v39
  %v118 = vunpack.c.l.b16 %v40
  %v119 = vunpack.c.l.b16 %v41
  %v120 = vunpack.c.l.b16 %v42
  %v121 = vunpack.c.l.b16 %v43
  %v122 = vunpack.c.l.b16 %v44
  %v123 = vunpack.c.l.b16 %v45
  %v124 = vunpack.c.l.b16 %v46
  %v125 = vunpack.c.l.b16 %v47
  %v126 = vunpack.c.l.b16 %v48
  %v127 = vunpack.c.l.b16 %v49
  %v128 = vunpack.c.l.b16 %v50
  %v129 = vunpack.c.l.b16 %v51
  %v130 = vunpack.c.l.b16 %v52
  %v131 = vunpack.c.l.b16 %v53
  %v132 = vunpack.c.l.b16 %v54
  %v133 = vunpack.c.l.b16 %v55
  %v134 = vunpack.c.l.b16 %v56
  %v135 = vunpack.c.l.b16 %v57
  %v136 = vunpack.c.l.b16 %v58
  %v137 = vunpack.c.l.b16 %v59
  %v138 = vpack.c.b16 %v107, %v106
  %v139 = vpack.c.b16 %v109, %v108
  %v140 = vpack.c.b16 %v111, %v110
  %v141 = vpack.c.b16 %v113, %v112
  %v142 = vpack.c.b16 %v115, %v114
  %v143 = vpack.c.b16 %v117, %v116
  %v144 = vpack.c.b16 %v119, %v118
  %v145 = vpack.c.b16 %v121, %v120
  %v146 = vpack.c.b16 %v123, %v122
  %v147 = vpack.c.b16 %v125, %v124
  %v148 = vpack.c.b16 %v127, %v126
  %v149 = vpack.c.b16 %v129, %v128
  %v150 = vpack.c.b16 %v131, %v130
  %v151 = vpack.c.b16 %v133, %v132
  %v152 = vpack.c.b16 %v135, %v134
  %v153 = vpack.c.b16 %v137, %v136
  %170 = vmatprep.subr.bf16.mxu0 0
  %171 = vmatpush1.bf16.msra.mxu0 %v145
  %172 = vmatprep.subr.bf16.mxu0 0
  %173 = vmatpush1.bf16.msra.mxu0 %v144
  %174 = vmatprep.subr.bf16.mxu0 0
  %175 = vmatpush1.bf16.msra.mxu0 %v143
  %176 = vmatprep.subr.bf16.mxu0 0
  %177 = vmatpush1.bf16.msra.mxu0 %v142
  %178 = vmatprep.subr.bf16.mxu0 0
  %179 = vmatpush1.bf16.msra.mxu0 %v141
  %180 = vmatprep.subr.bf16.mxu0 0
  %181 = vmatpush1.bf16.msra.mxu0 %v140
  %182 = vmatprep.subr.bf16.mxu0 0
  %183 = vmatpush1.bf16.msra.mxu0 %v139
  %184 = vmatprep.subr.bf16.mxu0 0
  %185 = vmatpush1.bf16.msra.mxu0 %v138
  %186 = vmatprep.subr.bf16.mxu0 0
  %187 = vmatpush2.bf16.msra.mxu0 %v153
  %188 = vmatprep.subr.bf16.mxu0 0
  %189 = vmatpush2.bf16.msra.mxu0 %v152
  %190 = vmatprep.subr.bf16.mxu0 0
  %191 = vmatpush2.bf16.msra.mxu0 %v151
  %192 = vmatprep.subr.bf16.mxu0 0
  %193 = vmatpush2.bf16.msra.mxu0 %v150
  %194 = vmatprep.subr.bf16.mxu0 0
  %195 = vmatpush2.bf16.msra.mxu0 %v149
  %196 = vmatprep.subr.bf16.mxu0 0
  %197 = vmatpush2.bf16.msra.mxu0 %v148
  %198 = vmatprep.subr.bf16.mxu0 0
  %199 = vmatpush2.bf16.msra.mxu0 %v147
  %200 = vmatprep.subr.bf16.mxu0 0
  %201 = vmatpush2.bf16.msra.mxu0 %v146
  %202 = vmatprep.mubr.bf16.mxu0 %v71
  %203 = vmatmul.mubr.bf16.gmra.mxu0 %v70
  %v204 = vpop.f32.mrf.mxu0
  %v205 = vadd.f32 %v65, %v204
  %v206 = vpop.f32.mrf.mxu0
  %v207 = vpop.f32.mrf.mxu0
  %v208 = vpop.f32.mrf.mxu0
  %209 = vdwg.mxu0
  %v210 = vmax.f32 %v205, 0.0
  %v211 = vpack.c.bf16 %v210, %v210
  %v212 = vld [vmem:[%s3] sm:$0xf]
  %v213 = vld [vmem:[%s3 + $0x4] sm:$0xf]
  %v214 = vld [vmem:[%s3 + $0x8] sm:$0xf]
  %v215 = vld [vmem:[%s3 + $0xc] sm:$0xf]
  %v216 = vld [vmem:[%s3 + $0x10] sm:$0xf]
  %v217 = vld [vmem:[%s3 + $0x14] sm:$0xf]
  %v218 = vld [vmem:[%s3 + $0x18] sm:$0xf]
  %v219 = vld [vmem:[%s3 + $0x1c] sm:$0xf]
  %v220 = vld [vmem:[%s3 + $0x20] sm:$0xf]
  %v221 = vld [vmem:[%s3 + $0x24] sm:$0xf]
  %v222 = vld [vmem:[%s3 + $0x28] sm:$0xf]
  %v223 = vld [vmem:[%s3 + $0x2c] sm:$0xf]
  %v224 = vld [vmem:[%s3 + $0x30] sm:$0xf]
  %v225 = vld [vmem:[%s3 + $0x34] sm:$0xf]
  %v226 = vld [vmem:[%s3 + $0x38] sm:$0xf]
  %v227 = vld [vmem:[%s3 + $0x3c] sm:$0xf]
  %v228 = vld [vmem:[%s4] sm:$0x1]
  %v230 = vlaneseq
  %v231 = vshrl.u32 %v230, 7
  %v232 = vsub.s32 0, %v231
  %v233 = vrot.slane %v228, %v232
  %v251 = vunpack.c.l.b16 %v212
  %v252 = vunpack.c.l.b16 %v213
  %v253 = vunpack.c.l.b16 %v214
  %v254 = vunpack.c.l.b16 %v215
  %v255 = vunpack.c.l.b16 %v216
  %v256 = vunpack.c.l.b16 %v217
  %v257 = vunpack.c.l.b16 %v218
  %v258 = vunpack.c.l.b16 %v219
  %v259 = vunpack.c.l.b16 %v220
  %v260 = vunpack.c.l.b16 %v221
  %v261 = vunpack.c.l.b16 %v222
  %v262 = vunpack.c.l.b16 %v223
  %v263 = vunpack.c.l.b16 %v224
  %v264 = vunpack.c.l.b16 %v225
  %v265 = vunpack.c.l.b16 %v226
  %v266 = vunpack.c.l.b16 %v227
  %v267 = vpack.c.b16 %v252, %v251
  %v268 = vpack.c.b16 %v254, %v253
  %v269 = vpack.c.b16 %v256, %v255
  %v270 = vpack.c.b16 %v258, %v257
  %v271 = vpack.c.b16 %v260, %v259
  %v272 = vpack.c.b16 %v262, %v261
  %v273 = vpack.c.b16 %v264, %v263
  %v274 = vpack.c.b16 %v266, %v265
  %283 = vmatprep.subr.bf16.mxu0 0
  %284 = vmatpush1.bf16.msra.mxu0 %v274
  %285 = vmatprep.subr.bf16.mxu0 0
  %286 = vmatpush1.bf16.msra.mxu0 %v273
  %287 = vmatprep.subr.bf16.mxu0 0
  %288 = vmatpush1.bf16.msra.mxu0 %v272
  %289 = vmatprep.subr.bf16.mxu0 0
  %290 = vmatpush1.bf16.msra.mxu0 %v271
  %291 = vmatprep.subr.bf16.mxu0 0
  %292 = vmatpush1.bf16.msra.mxu0 %v270
  %293 = vmatprep.subr.bf16.mxu0 0
  %294 = vmatpush1.bf16.msra.mxu0 %v269
  %295 = vmatprep.subr.bf16.mxu0 0
  %296 = vmatpush1.bf16.msra.mxu0 %v268
  %297 = vmatprep.subr.bf16.mxu0 0
  %298 = vmatpush1.bf16.msra.mxu0 %v267
  %299 = vmatprep.subr.bf16.mxu0 0
  %300 = vmatpush2.bf16.msra.mxu0 0
  %301 = vmatprep.subr.bf16.mxu0 0
  %302 = vmatpush2.bf16.msra.mxu0 0
  %303 = vmatprep.subr.bf16.mxu0 0
  %304 = vmatpush2.bf16.msra.mxu0 0
  %305 = vmatprep.subr.bf16.mxu0 0
  %306 = vmatpush2.bf16.msra.mxu0 0
  %307 = vmatprep.subr.bf16.mxu0 0
  %308 = vmatpush2.bf16.msra.mxu0 0
  %309 = vmatprep.subr.bf16.mxu0 0
  %310 = vmatpush2.bf16.msra.mxu0 0
  %311 = vmatprep.subr.bf16.mxu0 0
  %312 = vmatpush2.bf16.msra.mxu0 0
  %313 = vmatprep.subr.bf16.mxu0 0
  %314 = vmatpush2.bf16.msra.mxu0 0
  %315 = vmatprep.mubr.bf16.mxu0 0
  %316 = vmatmul.mubr.bf16.gmra.mxu0 %v211
  %v317 = vpop.f32.mrf.mxu0
  %v318 = vadd.f32 %v233, %v317
  %v319 = vpop.f32.mrf.mxu0
  %v320 = vpop.f32.mrf.mxu0
  %v321 = vpop.f32.mrf.mxu0
  %322 = vdwg.mxu0
  %v323 = vmax.f32 %v318, 0.0
  %v324 = vpack.c.bf16 %v323, %v323
  %v325 = vld [vmem:[%s5] sm:$0xff]
  %v326 = vld [vmem:[%s5 + $0x8] sm:$0xff]
  %v327 = vld [vmem:[%s5 + $0x10] sm:$0xff]
  %v328 = vld [vmem:[%s5 + $0x18] sm:$0xff]
  %v329 = vld [vmem:[%s5 + $0x20] sm:$0xff]
  %v330 = vld [vmem:[%s5 + $0x28] sm:$0xff]
  %v331 = vld [vmem:[%s5 + $0x30] sm:$0xff]
  %v332 = vld [vmem:[%s5 + $0x38] sm:$0xff]
  %v333 = vld [vmem:[%s5 + $0x40] sm:$0xff]
  %v334 = vld [vmem:[%s5 + $0x48] sm:$0xff]
  %v335 = vld [vmem:[%s5 + $0x50] sm:$0xff]
  %v336 = vld [vmem:[%s5 + $0x58] sm:$0xff]
  %v337 = vld [vmem:[%s5 + $0x60] sm:$0xff]
  %v338 = vld [vmem:[%s5 + $0x68] sm:$0xff]
  %v339 = vld [vmem:[%s5 + $0x70] sm:$0xff]
  %v340 = vld [vmem:[%s5 + $0x78] sm:$0xff]
  %v341 = vld [vmem:[%s6] sm:$0x3]
  %v343 = vlaneseq
  %v344 = vshrl.u32 %v343, 7
  %v345 = vsub.s32 0, %v344
  %v346 = vrot.slane %v341, %v345
  %v347 = vlaneseq
  %v348 = vshrl.u32 %v347, 7
  %v349 = vsub.s32 1, %v348
  %v350 = vrot.slane %v341, %v349
  %v369 = vunpack.c.l.b16 %v325
  %v370 = vunpack.c.h.b16 %v325
  %v371 = vunpack.c.l.b16 %v326
  %v372 = vunpack.c.h.b16 %v326
  %v373 = vunpack.c.l.b16 %v327
  %v374 = vunpack.c.h.b16 %v327
  %v375 = vunpack.c.l.b16 %v328
  %v376 = vunpack.c.h.b16 %v328
  %v377 = vunpack.c.l.b16 %v329
  %v378 = vunpack.c.h.b16 %v329
  %v379 = vunpack.c.l.b16 %v330
  %v380 = vunpack.c.h.b16 %v330
  %v381 = vunpack.c.l.b16 %v331
  %v382 = vunpack.c.h.b16 %v331
  %v383 = vunpack.c.l.b16 %v332
  %v384 = vunpack.c.h.b16 %v332
  %v385 = vunpack.c.l.b16 %v333
  %v386 = vunpack.c.h.b16 %v333
  %v387 = vunpack.c.l.b16 %v334
  %v388 = vunpack.c.h.b16 %v334
  %v389 = vunpack.c.l.b16 %v335
  %v390 = vunpack.c.h.b16 %v335
  %v391 = vunpack.c.l.b16 %v336
  %v392 = vunpack.c.h.b16 %v336
  %v393 = vunpack.c.l.b16 %v337
  %v394 = vunpack.c.h.b16 %v337
  %v395 = vunpack.c.l.b16 %v338
  %v396 = vunpack.c.h.b16 %v338
  %v397 = vunpack.c.l.b16 %v339
  %v398 = vunpack.c.h.b16 %v339
  %v399 = vunpack.c.l.b16 %v340
  %v400 = vunpack.c.h.b16 %v340
  %v401 = vpack.c.b16 %v371, %v369
  %v402 = vpack.c.b16 %v372, %v370
  %v403 = vpack.c.b16 %v375, %v373
  %v404 = vpack.c.b16 %v376, %v374
  %v405 = vpack.c.b16 %v379, %v377
  %v406 = vpack.c.b16 %v380, %v378
  %v407 = vpack.c.b16 %v383, %v381
  %v408 = vpack.c.b16 %v384, %v382
  %v409 = vpack.c.b16 %v387, %v385
  %v410 = vpack.c.b16 %v388, %v386
  %v411 = vpack.c.b16 %v391, %v389
  %v412 = vpack.c.b16 %v392, %v390
  %v413 = vpack.c.b16 %v395, %v393
  %v414 = vpack.c.b16 %v396, %v394
  %v415 = vpack.c.b16 %v399, %v397
  %v416 = vpack.c.b16 %v400, %v398
  %433 = vmatprep.subr.bf16.mxu0 %v416
  %434 = vmatpush1.bf16.msra.mxu0 %v415
  %435 = vmatprep.subr.bf16.mxu0 %v414
  %436 = vmatpush1.bf16.msra.mxu0 %v413
  %437 = vmatprep.subr.bf16.mxu0 %v412
  %438 = vmatpush1.bf16.msra.mxu0 %v411
  %439 = vmatprep.subr.bf16.mxu0 %v410
  %440 = vmatpush1.bf16.msra.mxu0 %v409
  %441 = vmatprep.subr.bf16.mxu0 %v408
  %442 = vmatpush1.bf16.msra.mxu0 %v407
  %443 = vmatprep.subr.bf16.mxu0 %v406
  %444 = vmatpush1.bf16.msra.mxu0 %v405
  %445 = vmatprep.subr.bf16.mxu0 %v404
  %446 = vmatpush1.bf16.msra.mxu0 %v403
  %447 = vmatprep.subr.bf16.mxu0 %v402
  %448 = vmatpush1.bf16.msra.mxu0 %v401
  %449 = vmatprep.subr.bf16.mxu0 0
  %450 = vmatpush2.bf16.msra.mxu0 0
  %451 = vmatprep.subr.bf16.mxu0 0
  %452 = vmatpush2.bf16.msra.mxu0 0
  %453 = vmatprep.subr.bf16.mxu0 0
  %454 = vmatpush2.bf16.msra.mxu0 0
  %455 = vmatprep.subr.bf16.mxu0 0
  %456 = vmatpush2.bf16.msra.mxu0 0
  %457 = vmatprep.subr.bf16.mxu0 0
  %458 = vmatpush2.bf16.msra.mxu0 0
  %459 = vmatprep.subr.bf16.mxu0 0
  %460 = vmatpush2.bf16.msra.mxu0 0
  %461 = vmatprep.subr.bf16.mxu0 0
  %462 = vmatpush2.bf16.msra.mxu0 0
  %463 = vmatprep.subr.bf16.mxu0 0
  %464 = vmatpush2.bf16.msra.mxu0 0
  %465 = vmatprep.mubr.bf16.mxu0 0
  %466 = vmatmul.mubr.bf16.gmra.mxu0 %v324
  %v467 = vpop.f32.mrf.mxu0
  %v468 = vadd.f32 %v346, %v467
  %v469 = vpop.f32.mrf.mxu0
  %v470 = vadd.f32 %v350, %v469
  %v471 = vpop.f32.mrf.mxu0
  %v472 = vpop.f32.mrf.mxu0
  %473 = vdwg.mxu0
  %474 = vst [vmem:[%s7] sm:$0xff] %v468
  %475 = vst [vmem:[%s7 + $0x8] sm:$0xff] %v470
  // Predicated region
  $region30: #{mlp_forward.1} parent=0 // pred_check
    _
  $region31: #{mlp_forward.1} parent=0 // pred_check_branch
    %477 = sbr.rel (0) target = $region33
  $region32: #{mlp_forward.1} parent=0 // pred_region
    _
  $region33: #{mlp_forward.1} parent=0 // pred_fallthru
    _
  // Predicated region
  $region34: #{mlp_forward.1} parent=0 // pred_check
    _
  $region35: #{mlp_forward.1} parent=0 // pred_check_branch
    %479 = sbr.rel (0) target = $region37
  $region36: #{mlp_forward.1} parent=0 // pred_region
    _
  $region37: #{mlp_forward.1} parent=0 // pred_fallthru
    _

</llo_original>
